<compile_context>
chip_gen: v6e
topology: v6e:2x2x1
jax: 0.10.0
libtpu: 0.0.40
codegen_flags: <defaults>
</compile_context>

<pallas_src>
import functools
import math

import jax
import jax.numpy as jnp
from jax.experimental import pallas as pl
from jax.experimental.pallas import tpu as pltpu

EPS = 0.001


def _round_up(x, m):
    return ((x + m - 1) // m) * m


def _chip_defaults():
    """Best-effort TPU-generation detection for tiling defaults.

    Returns (block_bytes_per_input, max_feature_splits, vmem_capacity_bytes).
    """
    kind = ""
    try:
        kind = jax.devices()[0].device_kind.lower()
    except Exception:
        pass
    is_v7 = ("v7" in kind) or ("7x" in kind)

    vmem_cap = None
    try:  # Preferred: ask the runtime directly.
        vmem_cap = getattr(pltpu.get_tpu_info(), "vmem_capacity_bytes", None)
    except Exception:
        vmem_cap = None
    if not vmem_cap:
        if "v2" in kind or "v3" in kind:
            vmem_cap = 16 * 1024 * 1024
        elif is_v7:
            vmem_cap = 64 * 1024 * 1024
        else:  # v4 / v5e / v6e
            vmem_cap = 128 * 1024 * 1024

    # Per-input streaming block: big enough that the ~0.35us/step grid overhead
    # is negligible at this generation's HBM bandwidth (8 MiB on v7x @3.2TB/s,
    # 16 MiB on v5e/v6e), small enough that 2 inputs x 2 pipeline buffers fit
    # comfortably inside VMEM.
    block_bytes = int(min(16 * 1024 * 1024, max(1024 * 1024, vmem_cap // 8)))
    # A feature-reduction split only pays off with >1 TensorCore per chip (v7x);
    # on 1-TC chips it just adds wasted clamped DMA and epilogue work.
    max_splits = 2 if is_v7 else 1
    return block_bytes, max_splits, vmem_cap


def _dice_partial_kernel(p_ref, t_ref, inter_ref, den_ref, *,
                         nk_per, nk_raw, tail_cols, has_tail, padded_steps):
    k = pl.program_id(2)                       # reduction step within the split
    blk = pl.program_id(1) * nk_per + k        # global feature-block index

    @pl.when(k == 0)
    def _init():
        inter_ref[...] = jnp.zeros_like(inter_ref)
        den_ref[...] = jnp.zeros_like(den_ref)

    def accumulate(valid_cols=None):
        p = p_ref[...].astype(jnp.float32)
        t = t_ref[...].astype(jnp.float32)
        if valid_cols is not None:
            # Zero columns past the logical feature width of this (tail) block.
            cols = jax.lax.broadcasted_iota(jnp.int32, p.shape, 1)
            keep = cols < valid_cols
            p = jnp.where(keep, p, 0.0)
            t = jnp.where(keep, t, 0.0)
        # Folded accumulators: intersection and the (psum + tsum) denominator.
        inter_ref[...] += jnp.sum(p * t, axis=1, keepdims=True)[None]
        den_ref[...] += jnp.sum(p + t, axis=1, keepdims=True)[None]

    if not has_tail and not padded_steps:
        # Every step is a full, in-range block: pure unmasked fast path.
        accumulate()
    elif nk_raw == 1 and not padded_steps:
        # Single ragged block: mask unconditionally.
        accumulate(valid_cols=tail_cols)
    else:
        n_full = nk_raw - 1 if has_tail else nk_raw

        @pl.when(blk < n_full)
        def _full():                           # bulk blocks: no mask overhead
            accumulate()

        if has_tail:
            @pl.when(blk == nk_raw - 1)
            def _tail():                       # the one ragged block: masked
                accumulate(valid_cols=tail_cols)
        # blk >= nk_raw: clamped padding step of an uneven split -> skip compute
        # entirely (its DMA re-reads the tail block but does no work).


def dice_loss_pallas(preds, trues, *, block_bytes=None, max_splits=None,
                     size_average=True):
    """Equivalent of DiceLoss(weight=None, size_average=True)(preds, trues)."""
    # TODO(synk): optional per-element `weight` buffer not supported (module default is None).
    assert preds.shape == trues.shape, "preds/trues must have identical shapes"
    num = preds.shape[0]
    d = math.prod(preds.shape[1:])
    itemsize = max(preds.dtype.itemsize, trues.dtype.itemsize)

    chip_block, chip_splits, vmem_cap = _chip_defaults()
    if block_bytes is None:
        block_bytes = chip_block
    if max_splits is None:
        max_splits = chip_splits

    # Sublane packing: split each flattened sample into `s` sub-rows (a free,
    # contiguous reshape) so vregs carry full sublanes even for tiny batches.
    # Any divisor <= 8 is allowed (<= 16 for 2-byte dtypes, which pack 16
    # sublanes per vreg).
    max_pack = 16 if itemsize <= 2 else 8
    s = 1
    for cand in range(max_pack, 1, -1):
        if d % cand == 0:
            s = cand
            break
    rows = num * s
    d_sub = d // s

    p2 = preds.reshape(rows, d_sub)
    t2 = trues.reshape(rows, d_sub)

    # Row tile: keep each DMA row segment long (feature tile >= ~2048 lanes)
    # and the (tr, td) block inside the per-input budget.  Only tile rows when
    # an exact multiple-of-8 divisor exists; otherwise fall back to full rows.
    # TODO(synk): pad/mask the row dim so huge prime-ish row counts can tile too.
    row_target = max(8, block_bytes // (2048 * itemsize))
    tr = rows
    if rows > row_target:
        for cand in range(min(row_target, rows), 7, -1):
            if rows % cand == 0 and cand % 8 == 0:
                tr = cand
                break
    nr = rows // tr

    # Feature tile: multiple of 128 lanes, sized so one input block ~ block_bytes.
    d_sub_pad = _round_up(d_sub, 128)
    td = max(128, (block_bytes // (tr * itemsize)) // 128 * 128)
    td = min(td, d_sub_pad)

    nk_raw = pl.cdiv(d_sub, td)                # real feature blocks
    has_tail = (d_sub % td) != 0               # last real block is ragged
    tail_cols = d_sub - (nk_raw - 1) * td      # valid cols in that block

    # Feature-reduction split across TensorCores (v7x only by default).
    n_split = max_splits if (max_splits > 1 and nk_raw >= max_splits) else 1
    nk_per = pl.cdiv(nk_raw, n_split)
    padded_steps = n_split * nk_per > nk_raw   # uneven split -> clamped steps

    def in_index(r, i, k):
        blk = i * nk_per + k
        if padded_steps:
            # Keep the block index in range; compute is skipped in-kernel.
            blk = jnp.minimum(blk, nk_raw - 1)
        return (r, blk)

    kernel = functools.partial(
        _dice_partial_kernel, nk_per=nk_per, nk_raw=nk_raw,
        tail_cols=tail_cols, has_tail=has_tail, padded_steps=padded_steps)

    # VMEM budget: 2 inputs x 2 pipeline buffers x (tr, td) block, with headroom,
    # capped per-generation (v7x has 64 MiB/TC; v5e/v6e 128 MiB).
    tile_bytes = tr * td * (preds.dtype.itemsize + trues.dtype.itemsize)
    vmem_limit = int(min(vmem_cap * 3 // 4,
                         max(2 * tile_bytes + (8 << 20), 32 << 20)))

    inter_parts, den_parts = pl.pallas_call(
        kernel,
        out_shape=(
            jax.ShapeDtypeStruct((n_split, rows, 1), jnp.float32),
            jax.ShapeDtypeStruct((n_split, rows, 1), jnp.float32),
        ),
        grid_spec=pltpu.PrefetchScalarGridSpec(
            num_scalar_prefetch=0,
            grid=(nr, n_split, nk_per),
            in_specs=[
                pl.BlockSpec((tr, td), in_index),
                pl.BlockSpec((tr, td), in_index),
            ],
            out_specs=[
                pl.BlockSpec((1, tr, 1), lambda r, i, k: (i, r, 0)),
                pl.BlockSpec((1, tr, 1), lambda r, i, k: (i, r, 0)),
            ],
        ),
        compiler_params=pltpu.CompilerParams(
            dimension_semantics=("parallel", "parallel", "arbitrary"),
            vmem_limit_bytes=vmem_limit,
        ),
    )(p2, t2)

    # Tiny epilogue in JAX: combine split partials, regroup sub-rows per sample,
    # then the clamped, batch-averaged dice score.
    inter = jnp.sum(inter_parts, axis=0)[:, 0].reshape(num, s).sum(axis=1)
    den = jnp.sum(den_parts, axis=0)[:, 0].reshape(num, s).sum(axis=1)
    scores = (2.0 * inter + EPS) / (den + EPS)
    if not size_average:
        return scores
    return jnp.clip(jnp.sum(scores) / num, 0.0, 1.0)


def dice_loss_ref(preds, trues):
    num = preds.shape[0]
    p = preds.reshape(num, -1).astype(jnp.float32)
    t = trues.reshape(num, -1).astype(jnp.float32)
    inter = jnp.sum(p * t, axis=1)
    scores = (2.0 * inter + EPS) / (jnp.sum(p, axis=1) + jnp.sum(t, axis=1) + EPS)
    return jnp.clip(jnp.sum(scores) / num, 0.0, 1.0)


if __name__ == "__main__":
    key = jax.random.PRNGKey(0)
    k1, k2, k3, k4, k5, k6 = jax.random.split(key, 6)

    # Test 1: NCHW f32, aligned feature size -> unmasked single-block fast path,
    # generation-default block sizing.
    x1 = jax.nn.sigmoid(jax.random.normal(k1, (2, 4, 16, 16), dtype=jnp.float32))
    y1 = (jax.random.uniform(k2, (2, 4, 16, 16)) > 0.5).astype(jnp.float32)
    out1 = jax.block_until_ready(jax.jit(dice_loss_pallas)(x1, y1))
    ref1 = dice_loss_ref(x1, y1)
    assert jnp.allclose(out1, ref1, atol=1e-5, rtol=1e-5), (out1, ref1)

    # Test 2: odd feature size, bf16, tiny block budget, single-TC configuration
    # -> exercises sublane packing (s=5), in-kernel cast and the masked-tail path.
    x2 = jax.nn.sigmoid(jax.random.normal(k3, (3, 5, 17, 19))).astype(jnp.bfloat16)
    y2 = (jax.random.uniform(k4, (3, 5, 17, 19)) > 0.5).astype(jnp.bfloat16)
    fn2 = jax.jit(functools.partial(dice_loss_pallas, block_bytes=4096, max_splits=1))
    out2 = jax.block_until_ready(fn2(x2, y2))
    ref2 = dice_loss_ref(x2, y2)
    assert jnp.allclose(out2, ref2, atol=1e-4, rtol=1e-4), (out2, ref2)

    # Test 3: larger batch, tiny block budget, forced 2-way split (v7x-style)
    # -> exercises row tiling, uneven-split clamped-step skip and the masked tail.
    x3 = jax.nn.sigmoid(jax.random.normal(k5, (16, 8, 32, 33), dtype=jnp.float32))
    y3 = (jax.random.uniform(k6, (16, 8, 32, 33)) > 0.5).astype(jnp.float32)
    fn3 = jax.jit(functools.partial(dice_loss_pallas, block_bytes=4096, max_splits=2))
    out3 = jax.block_until_ready(fn3(x3, y3))
    ref3 = dice_loss_ref(x3, y3)
    assert jnp.allclose(out3, ref3, atol=1e-5, rtol=1e-5), (out3, ref3)

    print("KERNEL_OK")
</pallas_src>

<mosaic_0001>
module attributes {stable_mosaic.version = 11 : i64} {
  func.func @_dice_partial_kernel(%arg0: i32, %arg1: i32, %arg2: i32, %arg3: memref<16x128xf32, #tpu.memory_space<vmem>>, %arg4: memref<16x128xf32, #tpu.memory_space<vmem>>, %arg5: memref<1x16x1xf32, #tpu.memory_space<vmem>>, %arg6: memref<1x16x1xf32, #tpu.memory_space<vmem>>) attributes {dimension_semantics = [#tpu.dimension_semantics<parallel>, #tpu.dimension_semantics<parallel>, #tpu.dimension_semantics<arbitrary>], iteration_bounds = array<i64: 1, 1, 1>, scalar_prefetch = 0 : i64, scratch_operands = 0 : i64, tpu.core_type = #tpu.core_type<tc>, window_params = [{transform_indices = @transform_0, window_bounds = array<i64: 16, 128>}, {transform_indices = @transform_1, window_bounds = array<i64: 16, 128>}, {transform_indices = @transform_2, window_bounds = array<i64: 1, 16, 1>}, {transform_indices = @transform_3, window_bounds = array<i64: 1, 16, 1>}]} {
    %c0_i32 = arith.constant 0 : i32
    %0 = arith.cmpi eq, %arg2, %c0_i32 : i32
    %1 = arith.extui %0 : i1 to i32
    %c0_i32_0 = arith.constant 0 : i32
    %2 = arith.cmpi ne, %1, %c0_i32_0 : i32
    scf.if %2 {
      %cst_17 = arith.constant 0.000000e+00 : f32
      %19 = vector.broadcast %cst_17 : f32 to vector<1x16x1xf32>
      %c0_18 = arith.constant 0 : index
      %c0_19 = arith.constant 0 : index
      %c0_20 = arith.constant 0 : index
      %20 = vector.load %arg5[%c0_18, %c0_19, %c0_20] : memref<1x16x1xf32, #tpu.memory_space<vmem>>, vector<1x16x1xf32>
      tpu.vector_store %arg5[%c0_18, %c0_19, %c0_20], %19 {strides = array<i32>} : memref<1x16x1xf32, #tpu.memory_space<vmem>>, vector<1x16x1xf32>,
      %cst_21 = arith.constant 0.000000e+00 : f32
      %21 = vector.broadcast %cst_21 : f32 to vector<1x16x1xf32>
      %c0_22 = arith.constant 0 : index
      %c0_23 = arith.constant 0 : index
      %c0_24 = arith.constant 0 : index
      %22 = vector.load %arg6[%c0_22, %c0_23, %c0_24] : memref<1x16x1xf32, #tpu.memory_space<vmem>>, vector<1x16x1xf32>
      tpu.vector_store %arg6[%c0_22, %c0_23, %c0_24], %21 {strides = array<i32>} : memref<1x16x1xf32, #tpu.memory_space<vmem>>, vector<1x16x1xf32>,
    } else {
    }
    %c0 = arith.constant 0 : index
    %c0_1 = arith.constant 0 : index
    %3 = vector.load %arg3[%c0, %c0_1] : memref<16x128xf32, #tpu.memory_space<vmem>>, vector<16x128xf32>
    %c0_2 = arith.constant 0 : index
    %c0_3 = arith.constant 0 : index
    %4 = vector.load %arg4[%c0_2, %c0_3] : memref<16x128xf32, #tpu.memory_space<vmem>>, vector<16x128xf32>
    %c0_4 = arith.constant 0 : index
    %c0_5 = arith.constant 0 : index
    %c0_6 = arith.constant 0 : index
    %5 = vector.load %arg5[%c0_4, %c0_5, %c0_6] : memref<1x16x1xf32, #tpu.memory_space<vmem>>, vector<1x16x1xf32>
    %6 = arith.mulf %3, %4 : vector<16x128xf32>
    %cst = arith.constant dense<0.000000e+00> : vector<16xf32>
    %7 = vector.multi_reduction <add>, %6, %cst [1] : vector<16x128xf32> to vector<16xf32>
    %8 = vector.shape_cast %7 : vector<16xf32> to vector<16x1xf32>
    %9 = vector.shape_cast %8 : vector<16x1xf32> to vector<1x16x1xf32>
    %10 = arith.addf %5, %9 : vector<1x16x1xf32>
    %c0_7 = arith.constant 0 : index
    %c0_8 = arith.constant 0 : index
    %c0_9 = arith.constant 0 : index
    %11 = vector.load %arg5[%c0_7, %c0_8, %c0_9] : memref<1x16x1xf32, #tpu.memory_space<vmem>>, vector<1x16x1xf32>
    tpu.vector_store %arg5[%c0_7, %c0_8, %c0_9], %10 {strides = array<i32>} : memref<1x16x1xf32, #tpu.memory_space<vmem>>, vector<1x16x1xf32>,
    %c0_10 = arith.constant 0 : index
    %c0_11 = arith.constant 0 : index
    %c0_12 = arith.constant 0 : index
    %12 = vector.load %arg6[%c0_10, %c0_11, %c0_12] : memref<1x16x1xf32, #tpu.memory_space<vmem>>, vector<1x16x1xf32>
    %13 = arith.addf %3, %4 : vector<16x128xf32>
    %cst_13 = arith.constant dense<0.000000e+00> : vector<16xf32>
    %14 = vector.multi_reduction <add>, %13, %cst_13 [1] : vector<16x128xf32> to vector<16xf32>
    %15 = vector.shape_cast %14 : vector<16xf32> to vector<16x1xf32>
    %16 = vector.shape_cast %15 : vector<16x1xf32> to vector<1x16x1xf32>
    %17 = arith.addf %12, %16 : vector<1x16x1xf32>
    %c0_14 = arith.constant 0 : index
    %c0_15 = arith.constant 0 : index
    %c0_16 = arith.constant 0 : index
    %18 = vector.load %arg6[%c0_14, %c0_15, %c0_16] : memref<1x16x1xf32, #tpu.memory_space<vmem>>, vector<1x16x1xf32>
    tpu.vector_store %arg6[%c0_14, %c0_15, %c0_16], %17 {strides = array<i32>} : memref<1x16x1xf32, #tpu.memory_space<vmem>>, vector<1x16x1xf32>,
    return
  }
  func.func @transform_0(%arg0: i32, %arg1: i32, %arg2: i32) -> (i32, i32) {
    %c1_i32 = arith.constant 1 : i32
    %0 = arith.muli %arg1, %c1_i32 : i32
    %1 = arith.addi %0, %arg2 : i32
    %c0_i32 = arith.constant 0 : i32
    return %arg0, %1 : i32, i32
  }
  func.func @transform_1(%arg0: i32, %arg1: i32, %arg2: i32) -> (i32, i32) {
    %c1_i32 = arith.constant 1 : i32
    %0 = arith.muli %arg1, %c1_i32 : i32
    %1 = arith.addi %0, %arg2 : i32
    %c0_i32 = arith.constant 0 : i32
    return %arg0, %1 : i32, i32
  }
  func.func @transform_2(%arg0: i32, %arg1: i32, %arg2: i32) -> (i32, i32, i32) {
    %c0_i32 = arith.constant 0 : i32
    %c0_i32_0 = arith.constant 0 : i32
    return %arg1, %arg0, %c0_i32 : i32, i32, i32
  }
  func.func @transform_3(%arg0: i32, %arg1: i32, %arg2: i32) -> (i32, i32, i32) {
    %c0_i32 = arith.constant 0 : i32
    %c0_i32_0 = arith.constant 0 : i32
    return %arg1, %arg0, %c0_i32 : i32, i32, i32
  }
}

</mosaic_0001>

<llo_original>
// kernel: squeeze.3
$region0: #{squeeze.3}
  %s0 = inlined_call_operand.vmem [shape: f32[16], index: 0, kind: input, shape index: {}]
  %s1 = inlined_call_operand.vmem [shape: f32[2,8], index: 1, kind: output, shape index: {}]
  $region1: #{squeeze.3} parent=0
    #allocation0 [shape = 'u8[4096]{0}', space=vmem, size = 0x1000, scoped, tag = 'scoped mem for output reshape']
    #allocation1 [shape = 'u8[4096]{0}', space=vmem, size = 0x1000, scoped, tag = 'scoped mem for input reshape']
    %s3 = sshll.u32 1, 1
    %s4 = ssub.s32 %s3, 1
    %v5 = vld [vmem:[%s0] sm:%s4]
    %6 = vst [vmem:[#allocation1] sm:%s4] %v5
    %v7 = vld [vmem:[#allocation1] sm:$0x1]
    %vm8 = vcmask 64512
    %9 = vst.msk [vmem:[#allocation0] sm:$0x1] %vm8, %v7
    %v10 = vld [vmem:[#allocation1] sm:$0x1]
    %11 = vrot.lane.b32.xlu0 %v10, 120
    %v12 = vpop.permute.xlu0 %11
    %vm13 = vcmask 64512
    %s14 = scalar_lea.vmem [#allocation0], 1
    %15 = vst.msk [vmem:[%s14] sm:$0x1] %vm13, %v12
    %s17 = sshll.u32 1, 2
    %s18 = ssub.s32 %s17, 1
    %v20 = vld [vmem:[#allocation0] sm:%s18]
    %s21 = sshll.u32 1, 2
    %s22 = ssub.s32 %s21, 1
    %23 = vst [vmem:[%s1] sm:%s22] %v20

// kernel: dice_loss_pallas.1
$region0: #{dice_loss_pallas.1}
  #allocation0 [shape = 'u32[]', space=smem, size = 0x4, offset = 0x4, fixed_abs, tag = 'smem constant byte address 0x4 - core index']
  #allocation1 [shape = 'u32[144,128]{1,0:T(1,128)}', space=vmem, size = 0x12000, scoped, tag = 'internal scratch']
  %s0 = inlined_call_operand.vmem [shape: f32[16,128], index: 0, kind: input, shape index: {}]
  %s1 = inlined_call_operand.vmem [shape: f32[16,128], index: 1, kind: input, shape index: {}]
  %s2 = inlined_call_operand.vmem [shape: f32[1,16,1], index: 2, kind: output, shape index: {0}]
  %s3 = inlined_call_operand.vmem [shape: f32[1,16,1], index: 3, kind: output, shape index: {1}]
  %4 = xla_tuple %s2, %s3
  %s5 = sld [smem:[#allocation0]]
  $region30: #{dice_loss_pallas.1} parent=0
    _
  %s7 = ssub.s32 1, %s5
  %s8 = scalar_select 0, %s7, %s5
  // Predicated region
  $region2: #{dice_loss_pallas.1} parent=0 // pred_check
    _
  $region3: #{dice_loss_pallas.1} parent=0 // pred_check_branch
    %10 = sbr.rel (0) target = $region5
  $region4: #{dice_loss_pallas.1} parent=0 // pred_region
    %s11 = sadd.s32 0, 0
    %p12 = scmp.lt.s32.totalorder %s11, 0
    %s13 = scalar_select %p12, %s11, 0
    %s14 = smul.addr %s13, 8
    %s15 = scalar_lea.vmem %s0, %s14
    %s16 = sadd.s32 0, 0
  $region5: #{dice_loss_pallas.1} parent=0 // pred_fallthru
    _
  // Predicated region
  $region6: #{dice_loss_pallas.1} parent=0 // pred_check
    _
  $region7: #{dice_loss_pallas.1} parent=0 // pred_check_branch
    %18 = sbr.rel (0) target = $region9
  $region8: #{dice_loss_pallas.1} parent=0 // pred_region
    %s19 = sadd.s32 0, 0
    %p20 = scmp.lt.s32.totalorder %s19, 0
    %s21 = scalar_select %p20, %s19, 0
    %s22 = smul.addr %s21, 8
    %s23 = scalar_lea.vmem %s1, %s22
    %s24 = sadd.s32 0, 0
  $region9: #{dice_loss_pallas.1} parent=0 // pred_fallthru
    _
  %s25 = sadd.s32 0, 0
  %p26 = scmp.lt.s32.totalorder %s25, 0
  %s27 = scalar_select %p26, %s25, 0
  %s28 = smul.addr %s27, 8
  %s29 = scalar_lea.vmem %s0, %s28
  %s30 = sadd.s32 0, 0
  %p31 = scmp.lt.s32.totalorder %s30, 0
  %s32 = scalar_select %p31, %s30, 0
  %s33 = smul.addr %s32, 8
  %s34 = scalar_lea.vmem %s1, %s33
  %s35 = sadd.s32 0, 0
  %p36 = scmp.lt.s32.totalorder %s35, 0
  %s37 = scalar_select %p36, %s35, 0
  %s38 = smul.addr %s37, 8
  %s39 = scalar_lea.vmem %s0, %s38
  %s40 = sadd.s32 0, 0
  %s41 = sadd.s32 0, 0
  %p42 = scmp.lt.s32.totalorder %s41, 0
  %s43 = scalar_select %p42, %s41, 0
  %s44 = smul.addr %s43, 8
  %s45 = scalar_lea.vmem %s1, %s44
  %s46 = sadd.s32 0, 0
  %p47 = scmp.eq.s32.totalorder 0, 0
  // Predicated region
  $region10: #{dice_loss_pallas.1} parent=0 // pred_check
    %p48 = pneg %p47
  $region11: #{dice_loss_pallas.1} parent=0 // pred_check_branch
    %50 = sbr.rel (%p48) target = $region13
  $region12: #{dice_loss_pallas.1} parent=0 // pred_region
    %vm51 = vcmask 7168
    %52 = vst.msk [vmem:[%s2] sm:$0xff] %vm51, 0.0
    %53 = vst.msk [vmem:[%s2 + $0x8] sm:$0xff] %vm51, 0.0
    %54 = vst.msk [vmem:[%s3] sm:$0xff] %vm51, 0.0
    %55 = vst.msk [vmem:[%s3 + $0x8] sm:$0xff] %vm51, 0.0
  $region13: #{dice_loss_pallas.1} parent=0 // pred_fallthru
    _
  %v56 = vld [vmem:[%s39] sm:$0xff]
  %v57 = vld [vmem:[%s39 + $0x8] sm:$0xff]
  %v58 = vld [vmem:[%s45] sm:$0xff]
  %v59 = vld [vmem:[%s45 + $0x8] sm:$0xff]
  %v60 = vld [vmem:[%s2] sm:$0xff]
  %v61 = vld [vmem:[%s2 + $0x8] sm:$0xff]
  %v62 = vmul.f32 %v56, %v58
  %v63 = vmul.f32 %v57, %v59
  %64 = vadd.xlane.f32.xlu0 %v62
  %v65 = vpop.xlane.xlu0 %64
  %66 = vadd.xlane.f32.xlu0 %v63
  %v67 = vpop.xlane.xlu0 %66
  %v68 = vadd.f32 %v60, %v65
  %v69 = vadd.f32 %v61, %v67
  %vm70 = vcmask 7168
  %71 = vst.msk [vmem:[%s2] sm:$0xff] %vm70, %v68
  %72 = vst.msk [vmem:[%s2 + $0x8] sm:$0xff] %vm70, %v69
  %v73 = vld [vmem:[%s3] sm:$0xff]
  %v74 = vld [vmem:[%s3 + $0x8] sm:$0xff]
  %v75 = vadd.f32 %v56, %v58
  %v76 = vadd.f32 %v57, %v59
  %77 = vadd.xlane.f32.xlu0 %v75
  %v78 = vpop.xlane.xlu0 %77
  %79 = vadd.xlane.f32.xlu0 %v76
  %v80 = vpop.xlane.xlu0 %79
  %v81 = vadd.f32 %v73, %v78
  %v82 = vadd.f32 %v74, %v80
  %83 = vst.msk [vmem:[%s3] sm:$0xff] %vm70, %v81
  %84 = vst.msk [vmem:[%s3 + $0x8] sm:$0xff] %vm70, %v82
  // Predicated region
  $region14: #{dice_loss_pallas.1} parent=0 // pred_check
    _
  $region15: #{dice_loss_pallas.1} parent=0 // pred_check_branch
    %86 = sbr.rel (0) target = $region17
  $region16: #{dice_loss_pallas.1} parent=0 // pred_region
    _
  $region17: #{dice_loss_pallas.1} parent=0 // pred_fallthru
    _
  // Predicated region
  $region18: #{dice_loss_pallas.1} parent=0 // pred_check
    _
  $region19: #{dice_loss_pallas.1} parent=0 // pred_check_branch
    %88 = sbr.rel (0) target = $region21
  $region20: #{dice_loss_pallas.1} parent=0 // pred_region
    _
  $region21: #{dice_loss_pallas.1} parent=0 // pred_fallthru
    _
  // Predicated region
  $region22: #{dice_loss_pallas.1} parent=0 // pred_check
    _
  $region23: #{dice_loss_pallas.1} parent=0 // pred_check_branch
    %90 = sbr.rel (0) target = $region25
  $region24: #{dice_loss_pallas.1} parent=0 // pred_region
    _
  $region25: #{dice_loss_pallas.1} parent=0 // pred_fallthru
    _
  // Predicated region
  $region26: #{dice_loss_pallas.1} parent=0 // pred_check
    _
  $region27: #{dice_loss_pallas.1} parent=0 // pred_check_branch
    %92 = sbr.rel (0) target = $region29
  $region28: #{dice_loss_pallas.1} parent=0 // pred_region
    _
  $region29: #{dice_loss_pallas.1} parent=0 // pred_fallthru
    _

</llo_original>
